<compile_context>
chip_gen: v7x
topology: tpu7x:2x2x1
jax: 0.10.0
libtpu: 0.0.40
codegen_flags: <defaults>
</compile_context>

<pallas_src>
import jax
import jax.numpy as jnp
from jax.experimental import pallas as pl
from jax.experimental.pallas import tpu as pltpu


# ----------------------------------------------------------------------------
# Kernel
# ----------------------------------------------------------------------------
def _mlp_kernel(xt_ref, w1_ref, b1_ref, w2_ref, b2_ref, o_ref):
    """One batch tile of DistributedNetL.

    xt_ref: (F, 8, TC) input, batch packed as 8 sublanes x TC lanes   [VMEM]
    w1_ref: (H*F,)     l1.weight flattened row-major (h*F + k)        [SMEM]
    b1_ref: (H,)       l1.bias                                        [SMEM]
    w2_ref: (H,)       l2.weight                                      [SMEM]
    b2_ref: (1,)       l2.bias                                        [SMEM]
    o_ref : (8, TC)    sigmoid output, dense sublane/lane slab        [VMEM]
    """
    f = xt_ref.shape[0]
    h_dim = b1_ref.shape[0]

    # Load the F feature slabs once; each is a dense (8, TC) f32 value.
    xs = [xt_ref[k] for k in range(f)]

    z = None
    for h in range(h_dim):                       # H is static -> fully unrolled
        # Layer 1, hidden unit h: bias folded into the accumulator init.
        acc = b1_ref[h] + w1_ref[h * f + 0] * xs[0]
        for k in range(1, f):
            acc = acc + w1_ref[h * f + k] * xs[k]
        t = jnp.tanh(acc)                        # (8, TC), EUP
        # Layer 2 contribution: reduction over a leading dim == plain VPU adds.
        term = w2_ref[h] * t
        z = term if z is None else z + term

    z = z + b2_ref[0]                            # (8, TC)

    # Sigmoid: EUP exp + approximate reciprocal (rides the otherwise-idle EUP
    # slot instead of a multi-step exact f32 divide).
    o_ref[...] = pl.reciprocal(1.0 + jnp.exp(-z), approx=True)


# ----------------------------------------------------------------------------
# Wrapper
# ----------------------------------------------------------------------------
def _round_up(n, m):
    return ((n + m - 1) // m) * m


_SMALL_BATCH_XLA_CUTOFF = 2048   # below this, fused XLA beats any kernel launch


def _reference(x, w1, b1, w2, b2):
    h = jnp.tanh(x @ w1.T + b1)                  # (B, H)
    return jax.nn.sigmoid(h @ w2.T + b2)         # (B, 1)


def _choose_tile_cols(C, tb):
    """Pick the lane-tile width (columns of the (8, C) batch layout)."""
    tc = _round_up(max(tb // 8, 128), 128)
    tc = min(tc, C)                 # C is a multiple of 128, so tc stays one
    # Keep >= 2 grid steps when the batch is big enough so the "parallel" grid
    # axis can be split across v7x's two TensorCores (no-op on v5e/v6e).
    if C >= 256 and pl.cdiv(C, tc) < 2:
        tc = max(128, _round_up(pl.cdiv(C, 2), 128))
    return tc


def distributed_net_l(x, w1, b1, w2, b2, *, tb=131072, force_pallas=False):
    """Forward pass of DistributedNetL.

    x : (B, F) float32  — sensing input (PyTorch layout)
    w1: (H, F) float32  — l1.weight (H = 10)
    b1: (H,)   float32  — l1.bias
    w2: (1, H) float32  — l2.weight
    b2: (1,)   float32  — l2.bias
    tb: batch elements per grid step (sweep 32768..262144, multiple of 1024).
    Returns (B, 1) float32 = sigmoid(tanh(x @ w1.T + b1) @ w2.T + b2).
    """
    if x.dtype != jnp.float32:
        raise TypeError(f"DistributedNetL kernel expects float32 input, got {x.dtype}")

    B, F = x.shape
    H = w1.shape[0]

    # Small-batch fast path: the controller() use case (B ~ 10) is hundreds of
    # FLOPs; kernel launch + DMA setup dominates, fused XLA is strictly faster.
    if B < _SMALL_BATCH_XLA_CUTOFF and not force_pallas:
        return _reference(x, w1, b1, w2, b2)

    # Pack the batch as 8 sublanes x C lanes.  Pad B up to a multiple of
    # 8*128 = 1024 so C is lane-aligned; pad+transpose+reshape is one fused
    # XLA pass over x (no separate materialized pad).
    Bp = _round_up(B, 8 * 128)
    C = Bp // 8
    xt = jnp.pad(x, ((0, Bp - B), (0, 0))).T.reshape(F, 8, C)   # (F, 8, C)

    # Scalars for SMEM.
    w1_flat = w1.reshape(-1)        # (H*F,), row-major: [h*F + k]
    w2_flat = w2.reshape(-1)        # (H,)

    tc = _choose_tile_cols(C, tb)
    grid = (pl.cdiv(C, tc),)

    out8 = pl.pallas_call(
        _mlp_kernel,
        out_shape=jax.ShapeDtypeStruct((8, C), jnp.float32),
        grid=grid,
        in_specs=[
            pl.BlockSpec((F, 8, tc), lambda i: (0, 0, i)),        # x tile (pipelined)
            pl.BlockSpec(memory_space=pltpu.MemorySpace.SMEM),    # w1 scalars
            pl.BlockSpec(memory_space=pltpu.MemorySpace.SMEM),    # b1 scalars
            pl.BlockSpec(memory_space=pltpu.MemorySpace.SMEM),    # w2 scalars
            pl.BlockSpec(memory_space=pltpu.MemorySpace.SMEM),    # b2 scalar
        ],
        out_specs=pl.BlockSpec((8, tc), lambda i: (0, i)),        # dense output slab
        compiler_params=pltpu.CompilerParams(
            dimension_semantics=("parallel",),        # megacore split on v7x
            vmem_limit_bytes=32 * 1024 * 1024,        # headroom when sweeping tb up
        ),
    )(xt, w1_flat, b1, w2_flat, b2)

    # (8, C) -> (Bp,) -> (B, 1); pure metadata reshape + slice on the XLA side.
    return out8.reshape(Bp)[:B].reshape(B, 1)


# ----------------------------------------------------------------------------
# Self-test
# ----------------------------------------------------------------------------
if __name__ == "__main__":
    key = jax.random.PRNGKey(0)
    k_x, k_w1, k_b1, k_w2, k_b2, k_x2, k_x3 = jax.random.split(key, 7)

    B, F, H = 8, 2, 10          # 8 agents, input_size = 2 sensing features, hidden 10

    # PyTorch-Linear-style uniform init, deterministic.
    bound1 = 1.0 / (F ** 0.5)
    bound2 = 1.0 / (H ** 0.5)
    w1 = jax.random.uniform(k_w1, (H, F), jnp.float32, -bound1, bound1)  # l1.weight
    b1 = jax.random.uniform(k_b1, (H,), jnp.float32, -bound1, bound1)    # l1.bias
    w2 = jax.random.uniform(k_w2, (1, H), jnp.float32, -bound2, bound2)  # l2.weight
    b2 = jax.random.uniform(k_b2, (1,), jnp.float32, -bound2, bound2)    # l2.bias

    # 1) Controller-sized batch: auto path (fused XLA, no kernel launch).
    x = jax.random.normal(k_x, (B, F), dtype=jnp.float32)
    out = jax.block_until_ready(distributed_net_l(x, w1, b1, w2, b2))
    ref = _reference(x, w1, b1, w2, b2)
    assert out.shape == (B, 1), out.shape
    assert jnp.allclose(out, ref, atol=1e-5, rtol=1e-5)

    # 2) Forced Pallas path at a small batch: exercises the kernel, single
    #    lane-aligned block with padded batch columns sliced off.
    #    Tolerance is loosened slightly for the approximate-reciprocal sigmoid.
    B2 = 300
    x2 = jax.random.normal(k_x2, (B2, F), dtype=jnp.float32)
    out2 = jax.block_until_ready(
        distributed_net_l(x2, w1, b1, w2, b2, force_pallas=True))
    ref2 = _reference(x2, w1, b1, w2, b2)
    assert out2.shape == (B2, 1), out2.shape
    assert jnp.allclose(out2, ref2, atol=5e-3, rtol=5e-3)

    # 3) Auto Pallas path: multi-block grid (>= 2 steps for v7x megacore) with a
    #    ragged last block.
    B3 = 5000
    x3 = jax.random.normal(k_x3, (B3, F), dtype=jnp.float32)
    out3 = jax.block_until_ready(distributed_net_l(x3, w1, b1, w2, b2))
    ref3 = _reference(x3, w1, b1, w2, b2)
    assert out3.shape == (B3, 1), out3.shape
    assert jnp.allclose(out3, ref3, atol=5e-3, rtol=5e-3)

    print("KERNEL_OK")
</pallas_src>

<mosaic_0001>
module attributes {stable_mosaic.version = 11 : i64} {
  func.func @_mlp_kernel(%arg0: i32, %arg1: memref<2x8x128xf32, #tpu.memory_space<vmem>>, %arg2: memref<20xf32, #tpu.memory_space<smem>>, %arg3: memref<10xf32, #tpu.memory_space<smem>>, %arg4: memref<10xf32, #tpu.memory_space<smem>>, %arg5: memref<1xf32, #tpu.memory_space<smem>>, %arg6: memref<8x128xf32, #tpu.memory_space<vmem>>) attributes {dimension_semantics = [#tpu.dimension_semantics<parallel>], iteration_bounds = array<i64: 1>, scalar_prefetch = 0 : i64, scratch_operands = 0 : i64, tpu.core_type = #tpu.core_type<tc>, window_params = [{transform_indices = @transform_0, window_bounds = array<i64: 2, 8, 128>}, {transform_indices = @transform_1, window_bounds = array<i64: 20>}, {transform_indices = @transform_2, window_bounds = array<i64: 10>}, {transform_indices = @transform_3, window_bounds = array<i64: 10>}, {transform_indices = @transform_4, window_bounds = array<i64: 1>}, {transform_indices = @transform_5, window_bounds = array<i64: 8, 128>}]} {
    %c0 = arith.constant 0 : index
    %c0_0 = arith.constant 0 : index
    %c0_1 = arith.constant 0 : index
    %0 = vector.load %arg1[%c0, %c0_0, %c0_1] : memref<2x8x128xf32, #tpu.memory_space<vmem>>, vector<1x8x128xf32>
    %1 = vector.shape_cast %0 : vector<1x8x128xf32> to vector<8x128xf32>
    %c1 = arith.constant 1 : index
    %c0_2 = arith.constant 0 : index
    %c0_3 = arith.constant 0 : index
    %2 = vector.load %arg1[%c1, %c0_2, %c0_3] : memref<2x8x128xf32, #tpu.memory_space<vmem>>, vector<1x8x128xf32>
    %3 = vector.shape_cast %2 : vector<1x8x128xf32> to vector<8x128xf32>
    %c0_4 = arith.constant 0 : index
    %4 = memref.load %arg3[%c0_4] : memref<10xf32, #tpu.memory_space<smem>>
    %c0_5 = arith.constant 0 : index
    %5 = memref.load %arg2[%c0_5] : memref<20xf32, #tpu.memory_space<smem>>
    %6 = vector.broadcast %5 : f32 to vector<8x128xf32>
    %7 = arith.mulf %6, %1 : vector<8x128xf32>
    %8 = vector.broadcast %4 : f32 to vector<8x128xf32>
    %9 = arith.addf %8, %7 : vector<8x128xf32>
    %c1_6 = arith.constant 1 : index
    %10 = memref.load %arg2[%c1_6] : memref<20xf32, #tpu.memory_space<smem>>
    %11 = vector.broadcast %10 : f32 to vector<8x128xf32>
    %12 = arith.mulf %11, %3 : vector<8x128xf32>
    %13 = arith.addf %9, %12 : vector<8x128xf32>
    %14 = math.tanh %13 : vector<8x128xf32>
    %c0_7 = arith.constant 0 : index
    %15 = memref.load %arg4[%c0_7] : memref<10xf32, #tpu.memory_space<smem>>
    %16 = vector.broadcast %15 : f32 to vector<8x128xf32>
    %17 = arith.mulf %16, %14 : vector<8x128xf32>
    %c1_8 = arith.constant 1 : index
    %18 = memref.load %arg3[%c1_8] : memref<10xf32, #tpu.memory_space<smem>>
    %c2 = arith.constant 2 : index
    %19 = memref.load %arg2[%c2] : memref<20xf32, #tpu.memory_space<smem>>
    %20 = vector.broadcast %19 : f32 to vector<8x128xf32>
    %21 = arith.mulf %20, %1 : vector<8x128xf32>
    %22 = vector.broadcast %18 : f32 to vector<8x128xf32>
    %23 = arith.addf %22, %21 : vector<8x128xf32>
    %c3 = arith.constant 3 : index
    %24 = memref.load %arg2[%c3] : memref<20xf32, #tpu.memory_space<smem>>
    %25 = vector.broadcast %24 : f32 to vector<8x128xf32>
    %26 = arith.mulf %25, %3 : vector<8x128xf32>
    %27 = arith.addf %23, %26 : vector<8x128xf32>
    %28 = math.tanh %27 : vector<8x128xf32>
    %c1_9 = arith.constant 1 : index
    %29 = memref.load %arg4[%c1_9] : memref<10xf32, #tpu.memory_space<smem>>
    %30 = vector.broadcast %29 : f32 to vector<8x128xf32>
    %31 = arith.mulf %30, %28 : vector<8x128xf32>
    %32 = arith.addf %17, %31 : vector<8x128xf32>
    %c2_10 = arith.constant 2 : index
    %33 = memref.load %arg3[%c2_10] : memref<10xf32, #tpu.memory_space<smem>>
    %c4 = arith.constant 4 : index
    %34 = memref.load %arg2[%c4] : memref<20xf32, #tpu.memory_space<smem>>
    %35 = vector.broadcast %34 : f32 to vector<8x128xf32>
    %36 = arith.mulf %35, %1 : vector<8x128xf32>
    %37 = vector.broadcast %33 : f32 to vector<8x128xf32>
    %38 = arith.addf %37, %36 : vector<8x128xf32>
    %c5 = arith.constant 5 : index
    %39 = memref.load %arg2[%c5] : memref<20xf32, #tpu.memory_space<smem>>
    %40 = vector.broadcast %39 : f32 to vector<8x128xf32>
    %41 = arith.mulf %40, %3 : vector<8x128xf32>
    %42 = arith.addf %38, %41 : vector<8x128xf32>
    %43 = math.tanh %42 : vector<8x128xf32>
    %c2_11 = arith.constant 2 : index
    %44 = memref.load %arg4[%c2_11] : memref<10xf32, #tpu.memory_space<smem>>
    %45 = vector.broadcast %44 : f32 to vector<8x128xf32>
    %46 = arith.mulf %45, %43 : vector<8x128xf32>
    %47 = arith.addf %32, %46 : vector<8x128xf32>
    %c3_12 = arith.constant 3 : index
    %48 = memref.load %arg3[%c3_12] : memref<10xf32, #tpu.memory_space<smem>>
    %c6 = arith.constant 6 : index
    %49 = memref.load %arg2[%c6] : memref<20xf32, #tpu.memory_space<smem>>
    %50 = vector.broadcast %49 : f32 to vector<8x128xf32>
    %51 = arith.mulf %50, %1 : vector<8x128xf32>
    %52 = vector.broadcast %48 : f32 to vector<8x128xf32>
    %53 = arith.addf %52, %51 : vector<8x128xf32>
    %c7 = arith.constant 7 : index
    %54 = memref.load %arg2[%c7] : memref<20xf32, #tpu.memory_space<smem>>
    %55 = vector.broadcast %54 : f32 to vector<8x128xf32>
    %56 = arith.mulf %55, %3 : vector<8x128xf32>
    %57 = arith.addf %53, %56 : vector<8x128xf32>
    %58 = math.tanh %57 : vector<8x128xf32>
    %c3_13 = arith.constant 3 : index
    %59 = memref.load %arg4[%c3_13] : memref<10xf32, #tpu.memory_space<smem>>
    %60 = vector.broadcast %59 : f32 to vector<8x128xf32>
    %61 = arith.mulf %60, %58 : vector<8x128xf32>
    %62 = arith.addf %47, %61 : vector<8x128xf32>
    %c4_14 = arith.constant 4 : index
    %63 = memref.load %arg3[%c4_14] : memref<10xf32, #tpu.memory_space<smem>>
    %c8 = arith.constant 8 : index
    %64 = memref.load %arg2[%c8] : memref<20xf32, #tpu.memory_space<smem>>
    %65 = vector.broadcast %64 : f32 to vector<8x128xf32>
    %66 = arith.mulf %65, %1 : vector<8x128xf32>
    %67 = vector.broadcast %63 : f32 to vector<8x128xf32>
    %68 = arith.addf %67, %66 : vector<8x128xf32>
    %c9 = arith.constant 9 : index
    %69 = memref.load %arg2[%c9] : memref<20xf32, #tpu.memory_space<smem>>
    %70 = vector.broadcast %69 : f32 to vector<8x128xf32>
    %71 = arith.mulf %70, %3 : vector<8x128xf32>
    %72 = arith.addf %68, %71 : vector<8x128xf32>
    %73 = math.tanh %72 : vector<8x128xf32>
    %c4_15 = arith.constant 4 : index
    %74 = memref.load %arg4[%c4_15] : memref<10xf32, #tpu.memory_space<smem>>
    %75 = vector.broadcast %74 : f32 to vector<8x128xf32>
    %76 = arith.mulf %75, %73 : vector<8x128xf32>
    %77 = arith.addf %62, %76 : vector<8x128xf32>
    %c5_16 = arith.constant 5 : index
    %78 = memref.load %arg3[%c5_16] : memref<10xf32, #tpu.memory_space<smem>>
    %c10 = arith.constant 10 : index
    %79 = memref.load %arg2[%c10] : memref<20xf32, #tpu.memory_space<smem>>
    %80 = vector.broadcast %79 : f32 to vector<8x128xf32>
    %81 = arith.mulf %80, %1 : vector<8x128xf32>
    %82 = vector.broadcast %78 : f32 to vector<8x128xf32>
    %83 = arith.addf %82, %81 : vector<8x128xf32>
    %c11 = arith.constant 11 : index
    %84 = memref.load %arg2[%c11] : memref<20xf32, #tpu.memory_space<smem>>
    %85 = vector.broadcast %84 : f32 to vector<8x128xf32>
    %86 = arith.mulf %85, %3 : vector<8x128xf32>
    %87 = arith.addf %83, %86 : vector<8x128xf32>
    %88 = math.tanh %87 : vector<8x128xf32>
    %c5_17 = arith.constant 5 : index
    %89 = memref.load %arg4[%c5_17] : memref<10xf32, #tpu.memory_space<smem>>
    %90 = vector.broadcast %89 : f32 to vector<8x128xf32>
    %91 = arith.mulf %90, %88 : vector<8x128xf32>
    %92 = arith.addf %77, %91 : vector<8x128xf32>
    %c6_18 = arith.constant 6 : index
    %93 = memref.load %arg3[%c6_18] : memref<10xf32, #tpu.memory_space<smem>>
    %c12 = arith.constant 12 : index
    %94 = memref.load %arg2[%c12] : memref<20xf32, #tpu.memory_space<smem>>
    %95 = vector.broadcast %94 : f32 to vector<8x128xf32>
    %96 = arith.mulf %95, %1 : vector<8x128xf32>
    %97 = vector.broadcast %93 : f32 to vector<8x128xf32>
    %98 = arith.addf %97, %96 : vector<8x128xf32>
    %c13 = arith.constant 13 : index
    %99 = memref.load %arg2[%c13] : memref<20xf32, #tpu.memory_space<smem>>
    %100 = vector.broadcast %99 : f32 to vector<8x128xf32>
    %101 = arith.mulf %100, %3 : vector<8x128xf32>
    %102 = arith.addf %98, %101 : vector<8x128xf32>
    %103 = math.tanh %102 : vector<8x128xf32>
    %c6_19 = arith.constant 6 : index
    %104 = memref.load %arg4[%c6_19] : memref<10xf32, #tpu.memory_space<smem>>
    %105 = vector.broadcast %104 : f32 to vector<8x128xf32>
    %106 = arith.mulf %105, %103 : vector<8x128xf32>
    %107 = arith.addf %92, %106 : vector<8x128xf32>
    %c7_20 = arith.constant 7 : index
    %108 = memref.load %arg3[%c7_20] : memref<10xf32, #tpu.memory_space<smem>>
    %c14 = arith.constant 14 : index
    %109 = memref.load %arg2[%c14] : memref<20xf32, #tpu.memory_space<smem>>
    %110 = vector.broadcast %109 : f32 to vector<8x128xf32>
    %111 = arith.mulf %110, %1 : vector<8x128xf32>
    %112 = vector.broadcast %108 : f32 to vector<8x128xf32>
    %113 = arith.addf %112, %111 : vector<8x128xf32>
    %c15 = arith.constant 15 : index
    %114 = memref.load %arg2[%c15] : memref<20xf32, #tpu.memory_space<smem>>
    %115 = vector.broadcast %114 : f32 to vector<8x128xf32>
    %116 = arith.mulf %115, %3 : vector<8x128xf32>
    %117 = arith.addf %113, %116 : vector<8x128xf32>
    %118 = math.tanh %117 : vector<8x128xf32>
    %c7_21 = arith.constant 7 : index
    %119 = memref.load %arg4[%c7_21] : memref<10xf32, #tpu.memory_space<smem>>
    %120 = vector.broadcast %119 : f32 to vector<8x128xf32>
    %121 = arith.mulf %120, %118 : vector<8x128xf32>
    %122 = arith.addf %107, %121 : vector<8x128xf32>
    %c8_22 = arith.constant 8 : index
    %123 = memref.load %arg3[%c8_22] : memref<10xf32, #tpu.memory_space<smem>>
    %c16 = arith.constant 16 : index
    %124 = memref.load %arg2[%c16] : memref<20xf32, #tpu.memory_space<smem>>
    %125 = vector.broadcast %124 : f32 to vector<8x128xf32>
    %126 = arith.mulf %125, %1 : vector<8x128xf32>
    %127 = vector.broadcast %123 : f32 to vector<8x128xf32>
    %128 = arith.addf %127, %126 : vector<8x128xf32>
    %c17 = arith.constant 17 : index
    %129 = memref.load %arg2[%c17] : memref<20xf32, #tpu.memory_space<smem>>
    %130 = vector.broadcast %129 : f32 to vector<8x128xf32>
    %131 = arith.mulf %130, %3 : vector<8x128xf32>
    %132 = arith.addf %128, %131 : vector<8x128xf32>
    %133 = math.tanh %132 : vector<8x128xf32>
    %c8_23 = arith.constant 8 : index
    %134 = memref.load %arg4[%c8_23] : memref<10xf32, #tpu.memory_space<smem>>
    %135 = vector.broadcast %134 : f32 to vector<8x128xf32>
    %136 = arith.mulf %135, %133 : vector<8x128xf32>
    %137 = arith.addf %122, %136 : vector<8x128xf32>
    %c9_24 = arith.constant 9 : index
    %138 = memref.load %arg3[%c9_24] : memref<10xf32, #tpu.memory_space<smem>>
    %c18 = arith.constant 18 : index
    %139 = memref.load %arg2[%c18] : memref<20xf32, #tpu.memory_space<smem>>
    %140 = vector.broadcast %139 : f32 to vector<8x128xf32>
    %141 = arith.mulf %140, %1 : vector<8x128xf32>
    %142 = vector.broadcast %138 : f32 to vector<8x128xf32>
    %143 = arith.addf %142, %141 : vector<8x128xf32>
    %c19 = arith.constant 19 : index
    %144 = memref.load %arg2[%c19] : memref<20xf32, #tpu.memory_space<smem>>
    %145 = vector.broadcast %144 : f32 to vector<8x128xf32>
    %146 = arith.mulf %145, %3 : vector<8x128xf32>
    %147 = arith.addf %143, %146 : vector<8x128xf32>
    %148 = math.tanh %147 : vector<8x128xf32>
    %c9_25 = arith.constant 9 : index
    %149 = memref.load %arg4[%c9_25] : memref<10xf32, #tpu.memory_space<smem>>
    %150 = vector.broadcast %149 : f32 to vector<8x128xf32>
    %151 = arith.mulf %150, %148 : vector<8x128xf32>
    %152 = arith.addf %137, %151 : vector<8x128xf32>
    %c0_26 = arith.constant 0 : index
    %153 = memref.load %arg5[%c0_26] : memref<1xf32, #tpu.memory_space<smem>>
    %154 = vector.broadcast %153 : f32 to vector<8x128xf32>
    %155 = arith.addf %152, %154 : vector<8x128xf32>
    %cst = arith.constant 0.000000e+00 : f32
    %156 = vector.broadcast %cst : f32 to vector<8x128xf32>
    %157 = arith.subf %156, %155 : vector<8x128xf32>
    %158 = math.exp %157 : vector<8x128xf32>
    %cst_27 = arith.constant 1.000000e+00 : f32
    %159 = vector.broadcast %cst_27 : f32 to vector<8x128xf32>
    %160 = arith.addf %159, %158 : vector<8x128xf32>
    %161 = tpu.reciprocal %160 {approx = true} : vector<8x128xf32> -> vector<8x128xf32>
    %c0_28 = arith.constant 0 : index
    %c0_29 = arith.constant 0 : index
    %162 = vector.load %arg6[%c0_28, %c0_29] : memref<8x128xf32, #tpu.memory_space<vmem>>, vector<8x128xf32>
    tpu.vector_store %arg6[%c0_28, %c0_29], %161 {strides = array<i32>} : memref<8x128xf32, #tpu.memory_space<vmem>>, vector<8x128xf32>,
    return
  }
  func.func @transform_0(%arg0: i32) -> (i32, i32, i32) {
    %c0_i32 = arith.constant 0 : i32
    %c0_i32_0 = arith.constant 0 : i32
    %c0_i32_1 = arith.constant 0 : i32
    return %c0_i32, %c0_i32_0, %arg0 : i32, i32, i32
  }
  func.func @transform_1(%arg0: i32) -> i32 {
    %c0_i32 = arith.constant 0 : i32
    %c0_i32_0 = arith.constant 0 : i32
    return %c0_i32 : i32
  }
  func.func @transform_2(%arg0: i32) -> i32 {
    %c0_i32 = arith.constant 0 : i32
    %c0_i32_0 = arith.constant 0 : i32
    return %c0_i32 : i32
  }
  func.func @transform_3(%arg0: i32) -> i32 {
    %c0_i32 = arith.constant 0 : i32
    %c0_i32_0 = arith.constant 0 : i32
    return %c0_i32 : i32
  }
  func.func @transform_4(%arg0: i32) -> i32 {
    %c0_i32 = arith.constant 0 : i32
    %c0_i32_0 = arith.constant 0 : i32
    return %c0_i32 : i32
  }
  func.func @transform_5(%arg0: i32) -> (i32, i32) {
    %c0_i32 = arith.constant 0 : i32
    %c0_i32_0 = arith.constant 0 : i32
    return %c0_i32, %arg0 : i32, i32
  }
}

</mosaic_0001>

<llo_original>
// kernel: tpu_custom_call.1
$region0: #{tpu_custom_call.1}
  #allocation0 [shape = 'u32[]', space=smem, size = 0x4, offset = 0x4, fixed_abs, tag = 'smem constant byte address 0x4 - core index']
  #allocation1 [shape = 'u32[144,128]{1,0:T(1,128)}', space=vmem, size = 0x12000, scoped, tag = 'internal scratch']
  #allocation2 [shape = 'f32[1]{0:T(128)S(6)}', space=smem, size = 0x200, scoped, tag = 'scoped memory for tpu_custom_call.1']
  %s0 = inlined_call_operand.hbm [shape: f32[2,8,128], index: 0, kind: input, shape index: {}]
  %s1 = inlined_call_operand.vmem [shape: f32[20], index: 1, kind: input, shape index: {}]
  %s2 = inlined_call_operand.vmem [shape: f32[10], index: 2, kind: input, shape index: {}]
  %s3 = inlined_call_operand.vmem [shape: f32[10], index: 3, kind: input, shape index: {}]
  %s4 = inlined_call_operand.<no memory space> [shape: f32[1], index: 4, kind: input, shape index: {}]
  %s5 = inlined_call_operand.hbm [shape: f32[8,128], index: 5, kind: output, shape index: {}]
  %s6 = sld [smem:[#allocation0]]
  $region46: #{tpu_custom_call.1} parent=0
    _
  %s8 = ssub.s32 1, %s6
  %s9 = scalar_select 0, %s8, %s6
  %10 = sst [smem:[#allocation2]] %s4
  $region1: #{tpu_custom_call.1} parent=0
    #allocation3 [shape = 'u8[8192]{0}', space=vmem, size = 0x2000, scoped, tag = 'input window, operand 0, single buffered']
    #allocation4 [shape = 's32[1]{0}', space=sflag, size = 0x4, scoped, tag = 'scoped memory for tpu_custom_call.1']
    #allocation5 [shape = 's32[1]{0}', space=sflag, size = 0x4, scoped, tag = 'scoped memory for tpu_custom_call.1']
    #allocation6 [shape = 's32[1]{0}', space=sflag, size = 0x4, scoped, tag = 'scoped memory for tpu_custom_call.1']
    #allocation7 [shape = 'u8[512]{0}', space=smem, size = 0x200, scoped, tag = 'input window, operand 1, single buffered']
    #allocation8 [shape = 'u8[512]{0}', space=smem, size = 0x200, scoped, tag = 'input window, operand 2, single buffered']
    #allocation9 [shape = 's32[1]{0}', space=sflag, size = 0x4, scoped, tag = 'scoped memory for tpu_custom_call.1']
    #allocation10 [shape = 'u8[512]{0}', space=smem, size = 0x200, scoped, tag = 'input window, operand 3, single buffered']
    #allocation11 [shape = 'u8[4096]{0}', space=vmem, size = 0x1000, scoped, tag = 'output window, operand 0, single buffered']
    %11 = vsyncpa [#allocation4], 0
    %12 = vsyncpa [#allocation6], 0
    %13 = vsyncpa [#allocation9], 0
    %14 = vsyncpa [#allocation5], 0
    // Predicated region
    $region2: #{tpu_custom_call.1} parent=1 // pred_check
      _
    $region3: #{tpu_custom_call.1} parent=1 // pred_check_branch
      %16 = sbr.rel (0) target = $region5
    $region4: #{tpu_custom_call.1} parent=1 // pred_region
      %s18 = ssub.s32 256, 256
      %19 = vsyncadd [#allocation4], %s18
      %s20 = sshll.u32 [#allocation3], 4
      %s21 = int_to_ptr.vmem [resolvable:$true] %s20
      %26 = dma.hbm_to_vmem [thread:$0]  %s0, 256, %s21, [#allocation4], 128, 128, 8
    $region5: #{tpu_custom_call.1} parent=1 // pred_fallthru
      _
    // Predicated region
    $region6: #{tpu_custom_call.1} parent=1 // pred_check
      _
    $region7: #{tpu_custom_call.1} parent=1 // pred_check_branch
      %28 = sbr.rel (0) target = $region9
    $region8: #{tpu_custom_call.1} parent=1 // pred_region
      %s30 = ssub.s32 16, 16
      %31 = vsyncadd [#allocation6], %s30
      %s33 = sshll.u32 %s1, 4
      %s34 = int_to_ptr.vmem [resolvable:$true] %s33
      %36 = dma.vmem_to_smem %s34, 16, [#allocation7], [#allocation6]
    $region9: #{tpu_custom_call.1} parent=1 // pred_fallthru
      _
    // Predicated region
    $region10: #{tpu_custom_call.1} parent=1 // pred_check
      _
    $region11: #{tpu_custom_call.1} parent=1 // pred_check_branch
      %38 = sbr.rel (0) target = $region13
    $region12: #{tpu_custom_call.1} parent=1 // pred_region
      %s40 = ssub.s32 16, 16
      %41 = vsyncadd [#allocation9], %s40
      %s43 = sshll.u32 %s2, 4
      %s44 = int_to_ptr.vmem [resolvable:$true] %s43
      %46 = dma.vmem_to_smem %s44, 16, [#allocation8], [#allocation9]
    $region13: #{tpu_custom_call.1} parent=1 // pred_fallthru
      _
    // Predicated region
    $region14: #{tpu_custom_call.1} parent=1 // pred_check
      _
    $region15: #{tpu_custom_call.1} parent=1 // pred_check_branch
      %48 = sbr.rel (0) target = $region17
    $region16: #{tpu_custom_call.1} parent=1 // pred_region
      %s50 = ssub.s32 16, 16
      %51 = vsyncadd [#allocation9], %s50
      %s53 = sshll.u32 %s3, 4
      %s54 = int_to_ptr.vmem [resolvable:$true] %s53
      %56 = dma.vmem_to_smem %s54, 16, [#allocation10], [#allocation9]
    $region17: #{tpu_custom_call.1} parent=1 // pred_fallthru
      _
    // Predicated region
    $region18: #{tpu_custom_call.1} parent=1 // pred_check
      _
    $region19: #{tpu_custom_call.1} parent=1 // pred_check_branch
      %58 = sbr.rel (0) target = $region21
    $region20: #{tpu_custom_call.1} parent=1 // pred_region
      _
    $region21: #{tpu_custom_call.1} parent=1 // pred_fallthru
      _
    // Predicated region
    $region22: #{tpu_custom_call.1} parent=1 // pred_check
      _
    $region23: #{tpu_custom_call.1} parent=1 // pred_check_branch
      %60 = sbr.rel (0) target = $region25
    $region24: #{tpu_custom_call.1} parent=1 // pred_region
      %61 = dma.done [#allocation4], 256
    $region25: #{tpu_custom_call.1} parent=1 // pred_fallthru
      _
    // Predicated region
    $region26: #{tpu_custom_call.1} parent=1 // pred_check
      _
    $region27: #{tpu_custom_call.1} parent=1 // pred_check_branch
      %63 = sbr.rel (0) target = $region29
    $region28: #{tpu_custom_call.1} parent=1 // pred_region
      %64 = dma.done [#allocation6], 16
    $region29: #{tpu_custom_call.1} parent=1 // pred_fallthru
      _
    // Predicated region
    $region30: #{tpu_custom_call.1} parent=1 // pred_check
      _
    $region31: #{tpu_custom_call.1} parent=1 // pred_check_branch
      %66 = sbr.rel (0) target = $region33
    $region32: #{tpu_custom_call.1} parent=1 // pred_region
      %67 = dma.done [#allocation9], 16
    $region33: #{tpu_custom_call.1} parent=1 // pred_fallthru
      _
    // Predicated region
    $region34: #{tpu_custom_call.1} parent=1 // pred_check
      _
    $region35: #{tpu_custom_call.1} parent=1 // pred_check_branch
      %69 = sbr.rel (0) target = $region37
    $region36: #{tpu_custom_call.1} parent=1 // pred_region
      %70 = dma.done [#allocation9], 16
    $region37: #{tpu_custom_call.1} parent=1 // pred_fallthru
      _
    %71 = sfence
    %v72 = vld [vmem:[#allocation3] sm:$0xff]
    %s73 = scalar_lea.vmem [#allocation3], 8
    %v74 = vld [vmem:[%s73] sm:$0xff]
    %s75 = sld [smem:[#allocation8]]
    %s76 = sld [smem:[#allocation7]]
    %v77 = vstv %s76
    %v78 = vmul.f32 %v77, %v72
    %v79 = vstv %s75
    %v80 = vadd.f32 %v79, %v78
    %s81 = sld [smem:[#allocation7 + $0x1]]
    %v82 = vstv %s81
    %v83 = vmul.f32 %v82, %v74
    %v84 = vadd.f32 %v80, %v83
    %v85 = vtanh.pop %v84
    %s86 = sld [smem:[#allocation10]]
    %v87 = vstv %s86
    %v88 = vmul.f32 %v87, %v85
    %s89 = sld [smem:[#allocation8 + $0x1]]
    %s90 = sld [smem:[#allocation7 + $0x2]]
    %v91 = vstv %s90
    %v92 = vmul.f32 %v91, %v72
    %v93 = vstv %s89
    %v94 = vadd.f32 %v93, %v92
    %s95 = sld [smem:[#allocation7 + $0x3]]
    %v96 = vstv %s95
    %v97 = vmul.f32 %v96, %v74
    %v98 = vadd.f32 %v94, %v97
    %v99 = vtanh.pop %v98
    %s100 = sld [smem:[#allocation10 + $0x1]]
    %v101 = vstv %s100
    %v102 = vmul.f32 %v101, %v99
    %v103 = vadd.f32 %v88, %v102
    %s104 = sld [smem:[#allocation8 + $0x2]]
    %s105 = sld [smem:[#allocation7 + $0x4]]
    %v106 = vstv %s105
    %v107 = vmul.f32 %v106, %v72
    %v108 = vstv %s104
    %v109 = vadd.f32 %v108, %v107
    %s110 = sld [smem:[#allocation7 + $0x5]]
    %v111 = vstv %s110
    %v112 = vmul.f32 %v111, %v74
    %v113 = vadd.f32 %v109, %v112
    %v114 = vtanh.pop %v113
    %s115 = sld [smem:[#allocation10 + $0x2]]
    %v116 = vstv %s115
    %v117 = vmul.f32 %v116, %v114
    %v118 = vadd.f32 %v103, %v117
    %s119 = sld [smem:[#allocation8 + $0x3]]
    %s120 = sld [smem:[#allocation7 + $0x6]]
    %v121 = vstv %s120
    %v122 = vmul.f32 %v121, %v72
    %v123 = vstv %s119
    %v124 = vadd.f32 %v123, %v122
    %s125 = sld [smem:[#allocation7 + $0x7]]
    %v126 = vstv %s125
    %v127 = vmul.f32 %v126, %v74
    %v128 = vadd.f32 %v124, %v127
    %v129 = vtanh.pop %v128
    %s130 = sld [smem:[#allocation10 + $0x3]]
    %v131 = vstv %s130
    %v132 = vmul.f32 %v131, %v129
    %v133 = vadd.f32 %v118, %v132
    %s134 = sld [smem:[#allocation8 + $0x4]]
    %s135 = sld [smem:[#allocation7 + $0x8]]
    %v136 = vstv %s135
    %v137 = vmul.f32 %v136, %v72
    %v138 = vstv %s134
    %v139 = vadd.f32 %v138, %v137
    %s140 = sld [smem:[#allocation7 + $0x9]]
    %v141 = vstv %s140
    %v142 = vmul.f32 %v141, %v74
    %v143 = vadd.f32 %v139, %v142
    %v144 = vtanh.pop %v143
    %s145 = sld [smem:[#allocation10 + $0x4]]
    %v146 = vstv %s145
    %v147 = vmul.f32 %v146, %v144
    %v148 = vadd.f32 %v133, %v147
    %s149 = sld [smem:[#allocation8 + $0x5]]
    %s150 = sld [smem:[#allocation7 + $0xa]]
    %v151 = vstv %s150
    %v152 = vmul.f32 %v151, %v72
    %v153 = vstv %s149
    %v154 = vadd.f32 %v153, %v152
    %s155 = sld [smem:[#allocation7 + $0xb]]
    %v156 = vstv %s155
    %v157 = vmul.f32 %v156, %v74
    %v158 = vadd.f32 %v154, %v157
    %v159 = vtanh.pop %v158
    %s160 = sld [smem:[#allocation10 + $0x5]]
    %v161 = vstv %s160
    %v162 = vmul.f32 %v161, %v159
    %v163 = vadd.f32 %v148, %v162
    %s164 = sld [smem:[#allocation8 + $0x6]]
    %s165 = sld [smem:[#allocation7 + $0xc]]
    %v166 = vstv %s165
    %v167 = vmul.f32 %v166, %v72
    %v168 = vstv %s164
    %v169 = vadd.f32 %v168, %v167
    %s170 = sld [smem:[#allocation7 + $0xd]]
    %v171 = vstv %s170
    %v172 = vmul.f32 %v171, %v74
    %v173 = vadd.f32 %v169, %v172
    %v174 = vtanh.pop %v173
    %s175 = sld [smem:[#allocation10 + $0x6]]
    %v176 = vstv %s175
    %v177 = vmul.f32 %v176, %v174
    %v178 = vadd.f32 %v163, %v177
    %s179 = sld [smem:[#allocation8 + $0x7]]
    %s180 = sld [smem:[#allocation7 + $0xe]]
    %v181 = vstv %s180
    %v182 = vmul.f32 %v181, %v72
    %v183 = vstv %s179
    %v184 = vadd.f32 %v183, %v182
    %s185 = sld [smem:[#allocation7 + $0xf]]
    %v186 = vstv %s185
    %v187 = vmul.f32 %v186, %v74
    %v188 = vadd.f32 %v184, %v187
    %v189 = vtanh.pop %v188
    %s190 = sld [smem:[#allocation10 + $0x7]]
    %v191 = vstv %s190
    %v192 = vmul.f32 %v191, %v189
    %v193 = vadd.f32 %v178, %v192
    %s194 = sld [smem:[#allocation8 + $0x8]]
    %s195 = sld [smem:[#allocation7 + $0x10]]
    %v196 = vstv %s195
    %v197 = vmul.f32 %v196, %v72
    %v198 = vstv %s194
    %v199 = vadd.f32 %v198, %v197
    %s200 = sld [smem:[#allocation7 + $0x11]]
    %v201 = vstv %s200
    %v202 = vmul.f32 %v201, %v74
    %v203 = vadd.f32 %v199, %v202
    %v204 = vtanh.pop %v203
    %s205 = sld [smem:[#allocation10 + $0x8]]
    %v206 = vstv %s205
    %v207 = vmul.f32 %v206, %v204
    %v208 = vadd.f32 %v193, %v207
    %s209 = sld [smem:[#allocation8 + $0x9]]
    %s210 = sld [smem:[#allocation7 + $0x12]]
    %v211 = vstv %s210
    %v212 = vmul.f32 %v211, %v72
    %v213 = vstv %s209
    %v214 = vadd.f32 %v213, %v212
    %s215 = sld [smem:[#allocation7 + $0x13]]
    %v216 = vstv %s215
    %v217 = vmul.f32 %v216, %v74
    %v218 = vadd.f32 %v214, %v217
    %v219 = vtanh.pop %v218
    %s220 = sld [smem:[#allocation10 + $0x9]]
    %v221 = vstv %s220
    %v222 = vmul.f32 %v221, %v219
    %v223 = vadd.f32 %v208, %v222
    %s224 = sld [smem:[#allocation2]]
    %v225 = vstv %s224
    %v226 = vadd.f32 %v223, %v225
    %v227 = vsub.f32 0.0, %v226
    %v228 = vmul.f32 %v227, 1.442695
    %v229 = vpow.pop %v228
    %v230 = vadd.f32 %v229, 1.0
    %v231 = vrcp.pop %v230
    %232 = vst [vmem:[#allocation11] sm:$0xff] %v231
    // Predicated region
    $region38: #{tpu_custom_call.1} parent=1 // pred_check
      _
    $region39: #{tpu_custom_call.1} parent=1 // pred_check_branch
      %234 = sbr.rel (0) target = $region41
    $region40: #{tpu_custom_call.1} parent=1 // pred_region
      %s236 = ssub.s32 128, 128
      %237 = vsyncadd [#allocation5], %s236
      %s239 = sshll.u32 [#allocation11], 4
      %s240 = int_to_ptr.vmem [resolvable:$true] %s239
      %242 = dma.vmem_to_hbm [thread:$0]  %s240, 128, %s5, [#allocation5]
    $region41: #{tpu_custom_call.1} parent=1 // pred_fallthru
      _
    // Predicated region
    $region42: #{tpu_custom_call.1} parent=1 // pred_check
      _
    $region43: #{tpu_custom_call.1} parent=1 // pred_check_branch
      %244 = sbr.rel (0) target = $region45
    $region44: #{tpu_custom_call.1} parent=1 // pred_region
      %245 = dma.done [#allocation5], 128
    $region45: #{tpu_custom_call.1} parent=1 // pred_fallthru
      _
    %246 = vsyncpa [#allocation4], 1
    %247 = vsyncpa [#allocation5], 1
    %248 = vsyncpa [#allocation6], 1
    %249 = vsyncpa [#allocation9], 1

</llo_original>
